<compile_context>
chip_gen: v5e
topology: v5e:2x2
jax: 0.10.0
libtpu: 0.0.40
codegen_flags: <defaults>
</compile_context>

<pallas_src>
import jax
import jax.numpy as jnp
from jax.experimental import pallas as pl
from jax.experimental.pallas import tpu as pltpu

_LANE = 128
_RESIDENT_MAX_ROWS = 2048               # keep table VMEM-resident up to this many rows
_RESIDENT_MAX_BYTES = 8 * 1024 * 1024   # ...and up to this many bytes (safe on v7x too)


def _round_up(x, m):
    return (x + m - 1) // m * m


# --------------------------------------------------------------------------
# Fast path: whole combined table resident in VMEM, single grid axis (rows).
# --------------------------------------------------------------------------
def _resident_embedding_kernel(idx_ref, table_ref, out_ref):
    rows = out_ref.shape[0]
    v_pad = table_ref.shape[0]
    idx = idx_ref[...]                                               # (rows, 1) int32
    col = jax.lax.broadcasted_iota(jnp.int32, (rows, v_pad), 1)
    onehot = (idx == col).astype(table_ref.dtype)                    # exact 0/1
    out_ref[...] = jnp.dot(
        onehot, table_ref[...], preferred_element_type=jnp.float32
    ).astype(out_ref.dtype)


# --------------------------------------------------------------------------
# Fallback: vocab-tiled reduction, accumulating directly into out_ref (f32).
# --------------------------------------------------------------------------
def _tiled_embedding_kernel(idx_ref, table_ref, out_ref):
    v = pl.program_id(1)

    @pl.when(v == 0)
    def _init():
        out_ref[...] = jnp.zeros_like(out_ref)

    rows = out_ref.shape[0]
    v_tile = table_ref.shape[0]
    idx_local = idx_ref[...] - v * v_tile                            # (rows, 1) shift
    col = jax.lax.broadcasted_iota(jnp.int32, (rows, v_tile), 1)     # un-shifted iota
    onehot = (idx_local == col).astype(table_ref.dtype)              # exact 0/1
    out_ref[...] += jnp.dot(
        onehot, table_ref[...], preferred_element_type=jnp.float32
    )


def fused_embedding_lookup(table_pad, flat_idx, *, row_tile, v_tile, d_valid):
    """Gather rows of `table_pad` ((V_pad, D_pad) f32, lane-dense) at `flat_idx`.

    Returns an (N, d_valid) f32 array (padding rows/lanes sliced off).
    """
    v_pad, d_pad = table_pad.shape
    n = flat_idx.shape[0]
    n_pad = _round_up(max(n, 1), row_tile)

    # Pad the index vector with -1: never matches any one-hot column -> the
    # padded rows are exactly zero and get sliced off below.
    idx2d = jnp.full((n_pad, 1), -1, jnp.int32).at[:n, 0].set(
        flat_idx.astype(jnp.int32))

    table_bytes = v_pad * d_pad * table_pad.dtype.itemsize
    resident = (v_pad <= _RESIDENT_MAX_ROWS) and (table_bytes <= _RESIDENT_MAX_BYTES)

    if resident:
        grid = (n_pad // row_tile,)
        flops = 2 * n_pad * v_pad * d_pad
        bytes_accessed = n_pad * 4 + v_pad * d_pad * 4 + n_pad * d_pad * 4
        out = pl.pallas_call(
            _resident_embedding_kernel,
            out_shape=jax.ShapeDtypeStruct((n_pad, d_pad), jnp.float32),
            grid_spec=pltpu.PrefetchScalarGridSpec(
                num_scalar_prefetch=0,
                grid=grid,
                in_specs=[
                    pl.BlockSpec((row_tile, 1), lambda r: (r, 0)),        # indices
                    pl.BlockSpec((v_pad, d_pad), lambda r: (0, 0)),       # resident table
                ],
                out_specs=pl.BlockSpec((row_tile, d_pad), lambda r: (r, 0)),
            ),
            compiler_params=pltpu.CompilerParams(
                dimension_semantics=("parallel",),
                vmem_limit_bytes=32 * 1024 * 1024,
            ),
            cost_estimate=pl.CostEstimate(
                flops=flops, transcendentals=0, bytes_accessed=bytes_accessed
            ),
        )(idx2d, table_pad)
    else:
        # TODO(synk): replace with a scalar-prefetch DMA row-gather for very
        # large vocabularies (table in HBM, memory_space=pl.ANY).
        grid = (n_pad // row_tile, v_pad // v_tile)
        flops = 2 * n_pad * v_pad * d_pad
        bytes_accessed = (
            n_pad * 4
            + grid[0] * v_pad * d_pad * 4      # table streamed once per row block
            + n_pad * d_pad * 4
        )
        out = pl.pallas_call(
            _tiled_embedding_kernel,
            out_shape=jax.ShapeDtypeStruct((n_pad, d_pad), jnp.float32),
            grid_spec=pltpu.PrefetchScalarGridSpec(
                num_scalar_prefetch=0,
                grid=grid,
                in_specs=[
                    pl.BlockSpec((row_tile, 1), lambda r, v: (r, 0)),     # indices
                    pl.BlockSpec((v_tile, d_pad), lambda r, v: (v, 0)),   # table tile
                ],
                out_specs=pl.BlockSpec((row_tile, d_pad), lambda r, v: (r, 0)),
            ),
            compiler_params=pltpu.CompilerParams(
                dimension_semantics=("parallel", "arbitrary"),
                vmem_limit_bytes=32 * 1024 * 1024,
            ),
            cost_estimate=pl.CostEstimate(
                flops=flops, transcendentals=0, bytes_accessed=bytes_accessed
            ),
        )(idx2d, table_pad)

    # NOTE: with embed_dim << 128 this slice is an extra HBM pass; consumers
    # that can read the padded (n_pad, d_pad) slab directly should do so.
    return out[:n, :d_valid]


def _choose_row_tile(n):
    """Row tile: multiple of 128 (full MXU M / unmasked stores), and >=2 row
    blocks when n >= 256 so the 'parallel' axis feeds both v7x TensorCores."""
    n128 = _round_up(max(n, 1), 128)
    if n128 <= 128:
        return 128
    return max(128, min(512, _round_up(n128 // 2, 128)))


class EmbeddingLayer:
    """JAX/Pallas port of the PyTorch EmbeddingLayer (forward pass)."""

    def __init__(self, item_size, time_size, pos_size, embed_dim, key):
        self.item_size = item_size
        self.time_size = time_size
        self.pos_size = pos_size
        self.embed_dim = embed_dim

        k_item, k_time, k_pos = jax.random.split(key, 3)

        def make_table(k, vocab):
            # nn.Embedding default init ~ N(0, 1); padding_idx=0 -> row 0 zero.
            w = jax.random.normal(k, (vocab + 1, embed_dim), dtype=jnp.float32)
            return w.at[0].set(0.0)

        self.item_table = make_table(k_item, item_size)
        self.time_table = make_table(k_time, time_size)
        self.pos_table = make_table(k_pos, pos_size)

        # Row offsets of each table inside the fused table.
        self.item_off = 0
        self.time_off = item_size + 1
        self.pos_off = self.time_off + time_size + 1
        v_total = self.pos_off + pos_size + 1

        # Lane-dense / MXU-aligned padding (computed once at init).
        self.d_pad = _round_up(embed_dim, _LANE)
        v_pad128 = _round_up(v_total, _LANE)
        self.v_tile = min(512, v_pad128)          # bound VMEM per vocab tile (fallback)
        self.v_pad = _round_up(v_total, self.v_tile)

        combined = jnp.zeros((self.v_pad, self.d_pad), jnp.float32)
        combined = combined.at[
            self.item_off:self.item_off + item_size + 1, :embed_dim].set(self.item_table)
        combined = combined.at[
            self.time_off:self.time_off + time_size + 1, :embed_dim].set(self.time_table)
        combined = combined.at[
            self.pos_off:self.pos_off + pos_size + 1, :embed_dim].set(self.pos_table)
        self.combined_table = combined

    def __call__(self, seq_items, times, pos, target_items):
        b, l = seq_items.shape
        seq_f = seq_items.reshape(-1).astype(jnp.int32) + self.item_off
        time_f = times.reshape(-1).astype(jnp.int32) + self.time_off
        pos_f = pos.reshape(-1).astype(jnp.int32) + self.pos_off
        tgt_f = target_items.reshape(-1).astype(jnp.int32) + self.item_off
        flat = jnp.concatenate([seq_f, time_f, pos_f, tgt_f], axis=0)

        n = flat.shape[0]
        row_tile = _choose_row_tile(n)

        out = fused_embedding_lookup(
            self.combined_table, flat,
            row_tile=row_tile, v_tile=self.v_tile, d_valid=self.embed_dim)

        bl = b * l
        seq_emb = out[:bl].reshape(b, l, self.embed_dim)
        time_emb = out[bl:2 * bl].reshape(b, l, self.embed_dim)
        pos_emb = out[2 * bl:3 * bl].reshape(b, l, self.embed_dim)
        target_emb = out[3 * bl:3 * bl + b].reshape(b, self.embed_dim)
        return seq_emb, time_emb, pos_emb, target_emb


if __name__ == "__main__":
    # Small deterministic config.
    item_size, time_size, pos_size, embed_dim = 50, 12, 8, 32
    batch, length = 2, 8

    root = jax.random.PRNGKey(0)
    k_params, k_seq, k_time, k_pos, k_tgt = jax.random.split(root, 5)

    layer = EmbeddingLayer(item_size, time_size, pos_size, embed_dim, k_params)

    seq_items = jax.random.randint(k_seq, (batch, length), 0, item_size + 1, dtype=jnp.int32)
    times = jax.random.randint(k_time, (batch, length), 0, time_size + 1, dtype=jnp.int32)
    pos = jax.random.randint(k_pos, (batch, length), 0, pos_size + 1, dtype=jnp.int32)
    target_items = jax.random.randint(k_tgt, (batch,), 1, item_size + 1, dtype=jnp.int32)

    seq_emb, time_emb, pos_emb, target_emb = layer(seq_items, times, pos, target_items)
    jax.block_until_ready((seq_emb, time_emb, pos_emb, target_emb))

    # Reference check against plain-JAX gather semantics (exact: 0/1 one-hot, f32 tables).
    assert seq_emb.shape == (batch, length, embed_dim)
    assert time_emb.shape == (batch, length, embed_dim)
    assert pos_emb.shape == (batch, length, embed_dim)
    assert target_emb.shape == (batch, embed_dim)
    assert jnp.allclose(seq_emb, layer.item_table[seq_items])
    assert jnp.allclose(time_emb, layer.time_table[times])
    assert jnp.allclose(pos_emb, layer.pos_table[pos])
    assert jnp.allclose(target_emb, layer.item_table[target_items])

    print("KERNEL_OK")
</pallas_src>

<mosaic_0001>
module attributes {stable_mosaic.version = 11 : i64} {
  func.func @_resident_embedding_kernel(%arg0: i32, %arg1: memref<128x1xi32, #tpu.memory_space<vmem>>, %arg2: memref<128x128xf32, #tpu.memory_space<vmem>>, %arg3: memref<128x128xf32, #tpu.memory_space<vmem>>) attributes {dimension_semantics = [#tpu.dimension_semantics<parallel>], iteration_bounds = array<i64: 1>, scalar_prefetch = 0 : i64, scratch_operands = 0 : i64, tpu.core_type = #tpu.core_type<tc>, window_params = [{transform_indices = @transform_0, window_bounds = array<i64: 128, 1>}, {pipeline_mode = #tpu.pipeline_mode<synchronous>, transform_indices = @transform_1, window_bounds = array<i64: 128, 128>}, {transform_indices = @transform_2, window_bounds = array<i64: 128, 128>}]} {
    %c0 = arith.constant 0 : index
    %c0_0 = arith.constant 0 : index
    %0 = vector.load %arg1[%c0, %c0_0] : memref<128x1xi32, #tpu.memory_space<vmem>>, vector<128x1xi32>
    %1 = tpu.iota {dimensions = array<i32: 1>} : vector<128x128xi32>
    %2 = vector.broadcast %0 : vector<128x1xi32> to vector<128x128xi32>
    %3 = arith.cmpi eq, %2, %1 : vector<128x128xi32>
    %4 = arith.extui %3 : vector<128x128xi1> to vector<128x128xi32>
    %5 = arith.sitofp %4 : vector<128x128xi32> to vector<128x128xf32>
    %c0_1 = arith.constant 0 : index
    %c0_2 = arith.constant 0 : index
    %6 = vector.load %arg2[%c0_1, %c0_2] : memref<128x128xf32, #tpu.memory_space<vmem>>, vector<128x128xf32>
    %cst = arith.constant dense<0.000000e+00> : vector<128x128xf32>
    %7 = tpu.matmul %5, %6, %cst {dimension_numbers = #tpu.dot_dimension_numbers<[1], [0], [0], [1], [0, 0, 1, 1], [], []>} : vector<128x128xf32>, vector<128x128xf32>, vector<128x128xf32> -> vector<128x128xf32>
    %c0_3 = arith.constant 0 : index
    %c0_4 = arith.constant 0 : index
    %8 = vector.load %arg3[%c0_3, %c0_4] : memref<128x128xf32, #tpu.memory_space<vmem>>, vector<128x128xf32>
    tpu.vector_store %arg3[%c0_3, %c0_4], %7 {strides = array<i32>} : memref<128x128xf32, #tpu.memory_space<vmem>>, vector<128x128xf32>,
    return
  }
  func.func @transform_0(%arg0: i32) -> (i32, i32) {
    %c0_i32 = arith.constant 0 : i32
    %c0_i32_0 = arith.constant 0 : i32
    return %arg0, %c0_i32 : i32, i32
  }
  func.func @transform_1(%arg0: i32) -> (i32, i32) {
    %c0_i32 = arith.constant 0 : i32
    %c0_i32_0 = arith.constant 0 : i32
    %c0_i32_1 = arith.constant 0 : i32
    return %c0_i32, %c0_i32_0 : i32, i32
  }
  func.func @transform_2(%arg0: i32) -> (i32, i32) {
    %c0_i32 = arith.constant 0 : i32
    %c0_i32_0 = arith.constant 0 : i32
    return %arg0, %c0_i32 : i32, i32
  }
}

</mosaic_0001>

<llo_original>
// kernel: tpu_custom_call.1
$region0: #{tpu_custom_call.1}
  #allocation0 [shape = 'u32[]', space=smem, size = 0x4, offset = 0x4, fixed_abs, tag = 'smem constant byte address 0x4 - core index']
  #allocation1 [shape = 'u32[72,128]{1,0:T(1,128)}', space=vmem, size = 0x9000, scoped, tag = 'internal scratch']
  %s0 = inlined_call_operand.vmem [shape: s32[128,1], index: 0, kind: input, shape index: {}]
  %s1 = inlined_call_operand.vmem [shape: f32[128,128], index: 1, kind: input, shape index: {}]
  %s2 = inlined_call_operand.hbm [shape: f32[128,128], index: 2, kind: output, shape index: {}]
  %s3 = sld [smem:[#allocation0]]
  $region18: #{tpu_custom_call.1} parent=0
    _
  %s5 = ssub.s32 1, %s3
  %s6 = scalar_select 0, %s5, %s3
  $region1: #{tpu_custom_call.1} parent=0
    #allocation2 [shape = 'u8[65536]{0}', space=vmem, size = 0x10000, scoped, tag = 'output window, operand 0, single buffered']
    #allocation3 [shape = 's32[1]{0}', space=sflag, size = 0x4, scoped, tag = 'scoped memory for tpu_custom_call.1']
    %7 = vsyncpa [#allocation3], 0
    // Predicated region
    $region2: #{tpu_custom_call.1} parent=1 // pred_check
      _
    $region3: #{tpu_custom_call.1} parent=1 // pred_check_branch
      %9 = sbr.rel (0) target = $region5
    $region4: #{tpu_custom_call.1} parent=1 // pred_region
      _
    $region5: #{tpu_custom_call.1} parent=1 // pred_fallthru
      _
    // Predicated region
    $region6: #{tpu_custom_call.1} parent=1 // pred_check
      _
    $region7: #{tpu_custom_call.1} parent=1 // pred_check_branch
      %11 = sbr.rel (0) target = $region9
    $region8: #{tpu_custom_call.1} parent=1 // pred_region
      _
    $region9: #{tpu_custom_call.1} parent=1 // pred_fallthru
      _
    %v12 = vld [vmem:[%s0] sm:$0xff]
    %v13 = vld [vmem:[%s0 + $0x8] sm:$0xff]
    %v14 = vld [vmem:[%s0 + $0x10] sm:$0xff]
    %v15 = vld [vmem:[%s0 + $0x18] sm:$0xff]
    %v16 = vld [vmem:[%s0 + $0x20] sm:$0xff]
    %v17 = vld [vmem:[%s0 + $0x28] sm:$0xff]
    %v18 = vld [vmem:[%s0 + $0x30] sm:$0xff]
    %v19 = vld [vmem:[%s0 + $0x38] sm:$0xff]
    %v20 = vld [vmem:[%s0 + $0x40] sm:$0xff]
    %v21 = vld [vmem:[%s0 + $0x48] sm:$0xff]
    %v22 = vld [vmem:[%s0 + $0x50] sm:$0xff]
    %v23 = vld [vmem:[%s0 + $0x58] sm:$0xff]
    %v24 = vld [vmem:[%s0 + $0x60] sm:$0xff]
    %v25 = vld [vmem:[%s0 + $0x68] sm:$0xff]
    %v26 = vld [vmem:[%s0 + $0x70] sm:$0xff]
    %v27 = vld [vmem:[%s0 + $0x78] sm:$0xff]
    %v28 = vlaneseq
    %v29 = vand.u32 %v28, 127
    %30 = vset.pattern.permute.xlu0 0
    %31 = vperm.xlu0 %30, %v12
    %v32 = vpop.permute.xlu0 %31
    %33 = vset.pattern.permute.xlu0 0
    %34 = vperm.xlu0 %33, %v13
    %v35 = vpop.permute.xlu0 %34
    %36 = vset.pattern.permute.xlu0 0
    %37 = vperm.xlu0 %36, %v14
    %v38 = vpop.permute.xlu0 %37
    %39 = vset.pattern.permute.xlu0 0
    %40 = vperm.xlu0 %39, %v15
    %v41 = vpop.permute.xlu0 %40
    %42 = vset.pattern.permute.xlu0 0
    %43 = vperm.xlu0 %42, %v16
    %v44 = vpop.permute.xlu0 %43
    %45 = vset.pattern.permute.xlu0 0
    %46 = vperm.xlu0 %45, %v17
    %v47 = vpop.permute.xlu0 %46
    %48 = vset.pattern.permute.xlu0 0
    %49 = vperm.xlu0 %48, %v18
    %v50 = vpop.permute.xlu0 %49
    %51 = vset.pattern.permute.xlu0 0
    %52 = vperm.xlu0 %51, %v19
    %v53 = vpop.permute.xlu0 %52
    %54 = vset.pattern.permute.xlu0 0
    %55 = vperm.xlu0 %54, %v20
    %v56 = vpop.permute.xlu0 %55
    %57 = vset.pattern.permute.xlu0 0
    %58 = vperm.xlu0 %57, %v21
    %v59 = vpop.permute.xlu0 %58
    %60 = vset.pattern.permute.xlu0 0
    %61 = vperm.xlu0 %60, %v22
    %v62 = vpop.permute.xlu0 %61
    %63 = vset.pattern.permute.xlu0 0
    %64 = vperm.xlu0 %63, %v23
    %v65 = vpop.permute.xlu0 %64
    %66 = vset.pattern.permute.xlu0 0
    %67 = vperm.xlu0 %66, %v24
    %v68 = vpop.permute.xlu0 %67
    %69 = vset.pattern.permute.xlu0 0
    %70 = vperm.xlu0 %69, %v25
    %v71 = vpop.permute.xlu0 %70
    %72 = vset.pattern.permute.xlu0 0
    %73 = vperm.xlu0 %72, %v26
    %v74 = vpop.permute.xlu0 %73
    %75 = vset.pattern.permute.xlu0 0
    %76 = vperm.xlu0 %75, %v27
    %v77 = vpop.permute.xlu0 %76
    %vm78 = vcmp.eq.s32.totalorder %v32, %v29
    %vm79 = vcmp.eq.s32.totalorder %v35, %v29
    %vm80 = vcmp.eq.s32.totalorder %v38, %v29
    %vm81 = vcmp.eq.s32.totalorder %v41, %v29
    %vm82 = vcmp.eq.s32.totalorder %v44, %v29
    %vm83 = vcmp.eq.s32.totalorder %v47, %v29
    %vm84 = vcmp.eq.s32.totalorder %v50, %v29
    %vm85 = vcmp.eq.s32.totalorder %v53, %v29
    %vm86 = vcmp.eq.s32.totalorder %v56, %v29
    %vm87 = vcmp.eq.s32.totalorder %v59, %v29
    %vm88 = vcmp.eq.s32.totalorder %v62, %v29
    %vm89 = vcmp.eq.s32.totalorder %v65, %v29
    %vm90 = vcmp.eq.s32.totalorder %v68, %v29
    %vm91 = vcmp.eq.s32.totalorder %v71, %v29
    %vm92 = vcmp.eq.s32.totalorder %v74, %v29
    %vm93 = vcmp.eq.s32.totalorder %v77, %v29
    %v94 = vsel %vm78, 1, 0
    %v95 = vsel %vm79, 1, 0
    %v96 = vsel %vm80, 1, 0
    %v97 = vsel %vm81, 1, 0
    %v98 = vsel %vm82, 1, 0
    %v99 = vsel %vm83, 1, 0
    %v100 = vsel %vm84, 1, 0
    %v101 = vsel %vm85, 1, 0
    %v102 = vsel %vm86, 1, 0
    %v103 = vsel %vm87, 1, 0
    %v104 = vsel %vm88, 1, 0
    %v105 = vsel %vm89, 1, 0
    %v106 = vsel %vm90, 1, 0
    %v107 = vsel %vm91, 1, 0
    %v108 = vsel %vm92, 1, 0
    %v109 = vsel %vm93, 1, 0
    %v110 = vcvt.s32.f32 %v94
    %v111 = vcvt.s32.f32 %v95
    %v112 = vcvt.s32.f32 %v96
    %v113 = vcvt.s32.f32 %v97
    %v114 = vcvt.s32.f32 %v98
    %v115 = vcvt.s32.f32 %v99
    %v116 = vcvt.s32.f32 %v100
    %v117 = vcvt.s32.f32 %v101
    %v118 = vcvt.s32.f32 %v102
    %v119 = vcvt.s32.f32 %v103
    %v120 = vcvt.s32.f32 %v104
    %v121 = vcvt.s32.f32 %v105
    %v122 = vcvt.s32.f32 %v106
    %v123 = vcvt.s32.f32 %v107
    %v124 = vcvt.s32.f32 %v108
    %v125 = vcvt.s32.f32 %v109
    %v126 = vld [vmem:[%s1] sm:$0xff]
    %v127 = vld [vmem:[%s1 + $0x8] sm:$0xff]
    %v128 = vld [vmem:[%s1 + $0x10] sm:$0xff]
    %v129 = vld [vmem:[%s1 + $0x18] sm:$0xff]
    %v130 = vld [vmem:[%s1 + $0x20] sm:$0xff]
    %v131 = vld [vmem:[%s1 + $0x28] sm:$0xff]
    %v132 = vld [vmem:[%s1 + $0x30] sm:$0xff]
    %v133 = vld [vmem:[%s1 + $0x38] sm:$0xff]
    %v134 = vld [vmem:[%s1 + $0x40] sm:$0xff]
    %v135 = vld [vmem:[%s1 + $0x48] sm:$0xff]
    %v136 = vld [vmem:[%s1 + $0x50] sm:$0xff]
    %v137 = vld [vmem:[%s1 + $0x58] sm:$0xff]
    %v138 = vld [vmem:[%s1 + $0x60] sm:$0xff]
    %v139 = vld [vmem:[%s1 + $0x68] sm:$0xff]
    %v140 = vld [vmem:[%s1 + $0x70] sm:$0xff]
    %v141 = vld [vmem:[%s1 + $0x78] sm:$0xff]
    %142 = vmatpush.msra.mxu0 %v141
    %143 = vmatpush.msra.mxu0 %v140
    %144 = vmatpush.msra.mxu0 %v139
    %145 = vmatpush.msra.mxu0 %v138
    %146 = vmatpush.msra.mxu0 %v137
    %147 = vmatpush.msra.mxu0 %v136
    %148 = vmatpush.msra.mxu0 %v135
    %149 = vmatpush.msra.mxu0 %v134
    %150 = vmatpush.msra.mxu0 %v133
    %151 = vmatpush.msra.mxu0 %v132
    %152 = vmatpush.msra.mxu0 %v131
    %153 = vmatpush.msra.mxu0 %v130
    %154 = vmatpush.msra.mxu0 %v129
    %155 = vmatpush.msra.mxu0 %v128
    %156 = vmatpush.msra.mxu0 %v127
    %157 = vmatpush.msra.mxu0 %v126
    %158 = vmatmul.f32.gmra.mxu0 %v110
    %v159 = vpop.f32.mrf.mxu0
    %v160 = vadd.f32 0.0, %v159
    %161 = vmatmul.f32.gmra.mxu0 %v111
    %v162 = vpop.f32.mrf.mxu0
    %v163 = vadd.f32 0.0, %v162
    %164 = vmatmul.f32.gmra.mxu0 %v112
    %v165 = vpop.f32.mrf.mxu0
    %v166 = vadd.f32 0.0, %v165
    %167 = vmatmul.f32.gmra.mxu0 %v113
    %v168 = vpop.f32.mrf.mxu0
    %v169 = vadd.f32 0.0, %v168
    %170 = vmatmul.f32.gmra.mxu0 %v114
    %v171 = vpop.f32.mrf.mxu0
    %v172 = vadd.f32 0.0, %v171
    %173 = vmatmul.f32.gmra.mxu0 %v115
    %v174 = vpop.f32.mrf.mxu0
    %v175 = vadd.f32 0.0, %v174
    %176 = vmatmul.f32.gmra.mxu0 %v116
    %v177 = vpop.f32.mrf.mxu0
    %v178 = vadd.f32 0.0, %v177
    %179 = vmatmul.f32.gmra.mxu0 %v117
    %v180 = vpop.f32.mrf.mxu0
    %v181 = vadd.f32 0.0, %v180
    %182 = vmatmul.f32.gmra.mxu0 %v118
    %v183 = vpop.f32.mrf.mxu0
    %v184 = vadd.f32 0.0, %v183
    %185 = vmatmul.f32.gmra.mxu0 %v119
    %v186 = vpop.f32.mrf.mxu0
    %v187 = vadd.f32 0.0, %v186
    %188 = vmatmul.f32.gmra.mxu0 %v120
    %v189 = vpop.f32.mrf.mxu0
    %v190 = vadd.f32 0.0, %v189
    %191 = vmatmul.f32.gmra.mxu0 %v121
    %v192 = vpop.f32.mrf.mxu0
    %v193 = vadd.f32 0.0, %v192
    %194 = vmatmul.f32.gmra.mxu0 %v122
    %v195 = vpop.f32.mrf.mxu0
    %v196 = vadd.f32 0.0, %v195
    %197 = vmatmul.f32.gmra.mxu0 %v123
    %v198 = vpop.f32.mrf.mxu0
    %v199 = vadd.f32 0.0, %v198
    %200 = vmatmul.f32.gmra.mxu0 %v124
    %v201 = vpop.f32.mrf.mxu0
    %v202 = vadd.f32 0.0, %v201
    %203 = vmatmul.f32.gmra.mxu0 %v125
    %v204 = vpop.f32.mrf.mxu0
    %v205 = vadd.f32 0.0, %v204
    %206 = vdwg.mxu0
    %207 = vst [vmem:[#allocation2] sm:$0xff] %v160
    %208 = vst [vmem:[#allocation2 + $0x8] sm:$0xff] %v163
    %209 = vst [vmem:[#allocation2 + $0x10] sm:$0xff] %v166
    %210 = vst [vmem:[#allocation2 + $0x18] sm:$0xff] %v169
    %211 = vst [vmem:[#allocation2 + $0x20] sm:$0xff] %v172
    %212 = vst [vmem:[#allocation2 + $0x28] sm:$0xff] %v175
    %213 = vst [vmem:[#allocation2 + $0x30] sm:$0xff] %v178
    %214 = vst [vmem:[#allocation2 + $0x38] sm:$0xff] %v181
    %215 = vst [vmem:[#allocation2 + $0x40] sm:$0xff] %v184
    %216 = vst [vmem:[#allocation2 + $0x48] sm:$0xff] %v187
    %217 = vst [vmem:[#allocation2 + $0x50] sm:$0xff] %v190
    %218 = vst [vmem:[#allocation2 + $0x58] sm:$0xff] %v193
    %219 = vst [vmem:[#allocation2 + $0x60] sm:$0xff] %v196
    %220 = vst [vmem:[#allocation2 + $0x68] sm:$0xff] %v199
    %221 = vst [vmem:[#allocation2 + $0x70] sm:$0xff] %v202
    %222 = vst [vmem:[#allocation2 + $0x78] sm:$0xff] %v205
    // Predicated region
    $region10: #{tpu_custom_call.1} parent=1 // pred_check
      _
    $region11: #{tpu_custom_call.1} parent=1 // pred_check_branch
      %224 = sbr.rel (0) target = $region13
    $region12: #{tpu_custom_call.1} parent=1 // pred_region
      %226 = vsyncadd [#allocation3], 0
      %s227 = sshll.u32 [#allocation2], 4
      %s228 = int_to_ptr.vmem [resolvable:$true] %s227
      %s229 = sshll.u32 %s2, 4
      %s230 = int_to_ptr.hbm [resolvable:$true] %s229
      %235 = dma.vmem_to_hbm [thread:$0]  %s228, 2048, %s230, [#allocation3], 128, 128, 8
    $region13: #{tpu_custom_call.1} parent=1 // pred_fallthru
      _
    // Predicated region
    $region14: #{tpu_custom_call.1} parent=1 // pred_check
      _
    $region15: #{tpu_custom_call.1} parent=1 // pred_check_branch
      %237 = sbr.rel (0) target = $region17
    $region16: #{tpu_custom_call.1} parent=1 // pred_region
      %239 = dma.done [#allocation3], 2048
    $region17: #{tpu_custom_call.1} parent=1 // pred_fallthru
      _
    %240 = vsyncpa [#allocation3], 1

</llo_original>
